<compile_context>
chip_gen: v7x
topology: tpu7x:2x2x1
jax: 0.10.0
libtpu: 0.0.40
codegen_flags: <defaults>
</compile_context>

<pallas_src>
import functools

import jax
import jax.numpy as jnp
from jax.experimental import pallas as pl
from jax.experimental.pallas import tpu as pltpu


def _round_up(x, m):
    return (x + m - 1) // m * m


def _dec_init_kernel(x_ref, wt_ref, b_ref, o_ref, acc_ref):
    # x_ref  : (tm, tk)   VMEM  slice of layer `l` of hidden
    # wt_ref : (tk, tn)   VMEM  slice of layer `l` of the transposed weight
    # b_ref  : (1, tn)    VMEM  bias slice (resident: constant index over reduction)
    # o_ref  : (tm, tn)   VMEM  output tile (resident across the reduction axes)
    # acc_ref: (tm, tn)   VMEM  f32 accumulator scratch
    l = pl.program_id(2)
    k = pl.program_id(3)

    @pl.when(jnp.logical_and(l == 0, k == 0))
    def _():
        acc_ref[...] = jnp.zeros_like(acc_ref)

    acc_ref[...] += jnp.dot(
        x_ref[...], wt_ref[...], preferred_element_type=jnp.float32
    )

    @pl.when(
        jnp.logical_and(
            l == pl.num_programs(2) - 1, k == pl.num_programs(3) - 1
        )
    )
    def _():
        # Epilogue stays in f32 (safe on v5e, which has no bf16 VPU/EUP path).
        o_ref[...] = jnp.tanh(acc_ref[...] + b_ref[...]).astype(o_ref.dtype)


@functools.partial(jax.jit, static_argnames=("tm", "tn", "tk"))
def _dec_init_pallas(x, w_t, b, tm, tn, tk):
    # x   : (n_layer, B_p, d_enc_p)     compute dtype (f32 or bf16)
    # w_t : (n_layer, d_enc_p, d_dec_p) compute dtype (pre-transposed, pre-padded)
    # b   : (1, d_dec_p)                f32
    n_layer, B_p, d_enc_p = x.shape
    d_dec_p = w_t.shape[2]

    grid = (B_p // tm, d_dec_p // tn, n_layer, d_enc_p // tk)

    flops = 2 * B_p * (n_layer * d_enc_p) * d_dec_p
    bytes_accessed = (
        x.size * x.dtype.itemsize
        + w_t.size * w_t.dtype.itemsize
        + b.size * b.dtype.itemsize
        + B_p * d_dec_p * 4
    )

    return pl.pallas_call(
        _dec_init_kernel,
        out_shape=jax.ShapeDtypeStruct((B_p, d_dec_p), jnp.float32),
        grid=grid,
        in_specs=[
            # hidden: layer axis squeezed, (tm, tk) tile of (B_p, d_enc_p)
            pl.BlockSpec((pl.Squeezed(), tm, tk), lambda i, j, l, k: (l, i, k)),
            # weight: layer axis squeezed, (tk, tn) tile of (d_enc_p, d_dec_p)
            pl.BlockSpec((pl.Squeezed(), tk, tn), lambda i, j, l, k: (l, k, j)),
            # bias tile; constant index over the reduction axes -> stays resident
            pl.BlockSpec((1, tn), lambda i, j, l, k: (0, j)),
        ],
        out_specs=pl.BlockSpec((tm, tn), lambda i, j, l, k: (i, j)),
        scratch_shapes=[pltpu.VMEM((tm, tn), jnp.float32)],
        compiler_params=pltpu.CompilerParams(
            dimension_semantics=("parallel", "parallel", "arbitrary", "arbitrary")
        ),
        cost_estimate=pl.CostEstimate(
            flops=flops,
            transcendentals=B_p * d_dec_p,
            bytes_accessed=bytes_accessed,
        ),
    )(x, w_t, b)


class DecInitPallas:
    """JAX/Pallas re-implementation of DecInit.

    tanh(Linear(concat(hidden, dim=feature))) with the concat fused into the
    kernel's reduction loop and the weight stored pre-transposed / pre-padded.
    """

    # Tile caps; clamped to the (padded) problem size.
    TM_MAX = 256
    TN_MAX = 256
    TK_MAX = 512

    def __init__(self, d_enc, d_dec, n_enc_layer, key, compute_dtype=jnp.float32):
        self.d_enc_model = d_enc
        self.d_dec_model = d_dec
        self.n_enc_layer = n_enc_layer
        self.compute_dtype = compute_dtype

        d_in = d_enc * n_enc_layer
        kw, kb = jax.random.split(key)
        bound = 1.0 / (d_in ** 0.5)
        # Keep the PyTorch parameter convention (d_dec, d_in) for reference checks.
        self.weight = jax.random.uniform(kw, (d_dec, d_in), jnp.float32, -bound, bound)
        self.bias = jax.random.uniform(kb, (d_dec,), jnp.float32, -bound, bound)

        # Pad feature / output dims to lane-dense multiples of 128 once at init.
        self.d_enc_p = _round_up(d_enc, 128)
        self.d_dec_p = _round_up(d_dec, 128)
        self.tn = min(self.TN_MAX, self.d_dec_p)
        self.tk = min(self.TK_MAX, self.d_enc_p)
        # Re-round in case the tile cap does not divide the first rounding.
        self.d_enc_p = _round_up(self.d_enc_p, self.tk)
        self.d_dec_p = _round_up(self.d_dec_p, self.tn)

        # Pre-transpose: (d_dec, d_in) -> (d_in, d_dec) -> (n_layer, d_enc, d_dec),
        # zero-pad, and store in the compute dtype (no per-call transpose/cast).
        w_t = self.weight.T.reshape(n_enc_layer, d_enc, d_dec)
        w_t_p = jnp.zeros((n_enc_layer, self.d_enc_p, self.d_dec_p), compute_dtype)
        self.w_t_p = w_t_p.at[:, :d_enc, :d_dec].set(w_t.astype(compute_dtype))

        b_p = jnp.zeros((1, self.d_dec_p), jnp.float32)
        self.b_p = b_p.at[0, :d_dec].set(self.bias)

    def __call__(self, hidden):
        # Normalize input to (n_layer, batch, d_enc) — no host-side concat copy.
        if isinstance(hidden, (tuple, list)):
            hidden = jnp.stack([jnp.asarray(h) for h in hidden], axis=0)
        else:
            hidden = jnp.asarray(hidden)
        if hidden.ndim == 2:
            # (batch, n_layer * d_enc) -> (n_layer, batch, d_enc); matches
            # torch.cat([h_0, ..., h_{L-1}], dim=1) column grouping.
            bsz = hidden.shape[0]
            hidden = hidden.reshape(
                bsz, self.n_enc_layer, self.d_enc_model
            ).transpose(1, 0, 2)

        n_layer, batch, d_enc = hidden.shape

        tm = min(self.TM_MAX, _round_up(batch, 8))
        batch_p = _round_up(batch, tm)

        x = hidden.astype(self.compute_dtype)
        if batch_p != batch or self.d_enc_p != d_enc:
            x = jnp.pad(
                x, ((0, 0), (0, batch_p - batch), (0, self.d_enc_p - d_enc))
            )

        out = _dec_init_pallas(x, self.w_t_p, self.b_p, tm, self.tn, self.tk)
        return out[:batch, : self.d_dec_model]


def _reference(hidden, weight, bias):
    if isinstance(hidden, (tuple, list)) or hidden.ndim == 3:
        hidden = jnp.concatenate([h for h in hidden], axis=1)
    hidden = hidden.reshape(hidden.shape[0], -1)
    return jnp.tanh(hidden @ weight.T + bias)


if __name__ == "__main__":
    key = jax.random.PRNGKey(0)
    k_param, k_hidden = jax.random.split(key)

    batch = 8
    d_enc = 32
    d_dec = 32
    n_enc_layer = 2

    # hidden as a 3D tensor (n_enc_layer, batch, d_enc), like stacked RNN final states.
    hidden = jax.random.normal(k_hidden, (n_enc_layer, batch, d_enc), jnp.float32)

    # f32 compute path (tight correctness check).
    module = DecInitPallas(d_enc, d_dec, n_enc_layer, k_param, compute_dtype=jnp.float32)
    out = jax.block_until_ready(module(hidden))
    ref = _reference(hidden, module.weight, module.bias)
    assert out.shape == (batch, d_dec), out.shape
    assert jnp.allclose(out, ref, atol=1e-5, rtol=1e-5), "f32 mismatch vs reference"

    # list-of-tensors input path must match the 3D-tensor path exactly
    # (same padded shapes -> reuses the same compiled pallas_call).
    out_list = jax.block_until_ready(module([hidden[0], hidden[1]]))
    assert jnp.allclose(out_list, out, atol=1e-6, rtol=1e-6), "list-input mismatch"

    print("KERNEL_OK")
</pallas_src>

<mosaic_0001>
module attributes {stable_mosaic.version = 11 : i64} {
  func.func @_dec_init_kernel(%arg0: i32, %arg1: i32, %arg2: i32, %arg3: i32, %arg4: memref<1x8x128xf32, #tpu.memory_space<vmem>>, %arg5: memref<1x128x128xf32, #tpu.memory_space<vmem>>, %arg6: memref<1x128xf32, #tpu.memory_space<vmem>>, %arg7: memref<8x128xf32, #tpu.memory_space<vmem>>, %arg8: memref<8x128xf32, #tpu.memory_space<vmem>>) attributes {dimension_semantics = [#tpu.dimension_semantics<parallel>, #tpu.dimension_semantics<parallel>, #tpu.dimension_semantics<arbitrary>, #tpu.dimension_semantics<arbitrary>], iteration_bounds = array<i64: 1, 1, 2, 1>, scalar_prefetch = 0 : i64, scratch_operands = 1 : i64, tpu.core_type = #tpu.core_type<tc>, window_params = [{transform_indices = @transform_0, window_bounds = array<i64: 1, 8, 128>}, {transform_indices = @transform_1, window_bounds = array<i64: 1, 128, 128>}, {transform_indices = @transform_2, window_bounds = array<i64: 1, 128>}, {transform_indices = @transform_3, window_bounds = array<i64: 8, 128>}]} {
    %c0_i32 = arith.constant 0 : i32
    %0 = arith.cmpi eq, %arg2, %c0_i32 : i32
    %c0_i32_0 = arith.constant 0 : i32
    %1 = arith.cmpi eq, %arg3, %c0_i32_0 : i32
    %2 = arith.andi %0, %1 : i1
    %3 = arith.extui %2 : i1 to i32
    %c0_i32_1 = arith.constant 0 : i32
    %4 = arith.cmpi ne, %3, %c0_i32_1 : i32
    scf.if %4 {
      %cst_13 = arith.constant 0.000000e+00 : f32
      %18 = vector.broadcast %cst_13 : f32 to vector<8x128xf32>
      %c0_14 = arith.constant 0 : index
      %c0_15 = arith.constant 0 : index
      %19 = vector.load %arg8[%c0_14, %c0_15] : memref<8x128xf32, #tpu.memory_space<vmem>>, vector<8x128xf32>
      tpu.vector_store %arg8[%c0_14, %c0_15], %18 {strides = array<i32>} : memref<8x128xf32, #tpu.memory_space<vmem>>, vector<8x128xf32>,
    } else {
    }
    %c0 = arith.constant 0 : index
    %c0_2 = arith.constant 0 : index
    %5 = vector.load %arg8[%c0, %c0_2] : memref<8x128xf32, #tpu.memory_space<vmem>>, vector<8x128xf32>
    %c0_3 = arith.constant 0 : index
    %c0_4 = arith.constant 0 : index
    %c0_5 = arith.constant 0 : index
    %6 = vector.load %arg4[%c0_3, %c0_4, %c0_5] : memref<1x8x128xf32, #tpu.memory_space<vmem>>, vector<1x8x128xf32>
    %7 = vector.shape_cast %6 : vector<1x8x128xf32> to vector<8x128xf32>
    %c0_6 = arith.constant 0 : index
    %c0_7 = arith.constant 0 : index
    %c0_8 = arith.constant 0 : index
    %8 = vector.load %arg5[%c0_6, %c0_7, %c0_8] : memref<1x128x128xf32, #tpu.memory_space<vmem>>, vector<1x128x128xf32>
    %9 = vector.shape_cast %8 : vector<1x128x128xf32> to vector<128x128xf32>
    %cst = arith.constant dense<0.000000e+00> : vector<8x128xf32>
    %10 = tpu.matmul %7, %9, %cst {dimension_numbers = #tpu.dot_dimension_numbers<[1], [0], [0], [1], [0, 0, 1, 1], [], []>} : vector<8x128xf32>, vector<128x128xf32>, vector<8x128xf32> -> vector<8x128xf32>
    %11 = arith.addf %5, %10 : vector<8x128xf32>
    %c0_9 = arith.constant 0 : index
    %c0_10 = arith.constant 0 : index
    %12 = vector.load %arg8[%c0_9, %c0_10] : memref<8x128xf32, #tpu.memory_space<vmem>>, vector<8x128xf32>
    tpu.vector_store %arg8[%c0_9, %c0_10], %11 {strides = array<i32>} : memref<8x128xf32, #tpu.memory_space<vmem>>, vector<8x128xf32>,
    %c1_i32 = arith.constant 1 : i32
    %13 = arith.cmpi eq, %arg2, %c1_i32 : i32
    %c0_i32_11 = arith.constant 0 : i32
    %14 = arith.cmpi eq, %arg3, %c0_i32_11 : i32
    %15 = arith.andi %13, %14 : i1
    %16 = arith.extui %15 : i1 to i32
    %c0_i32_12 = arith.constant 0 : i32
    %17 = arith.cmpi ne, %16, %c0_i32_12 : i32
    scf.if %17 {
      %c0_13 = arith.constant 0 : index
      %c0_14 = arith.constant 0 : index
      %18 = vector.load %arg8[%c0_13, %c0_14] : memref<8x128xf32, #tpu.memory_space<vmem>>, vector<8x128xf32>
      %c0_15 = arith.constant 0 : index
      %c0_16 = arith.constant 0 : index
      %19 = vector.load %arg6[%c0_15, %c0_16] : memref<1x128xf32, #tpu.memory_space<vmem>>, vector<1x128xf32>
      %20 = vector.broadcast %19 : vector<1x128xf32> to vector<8x128xf32>
      %21 = arith.addf %18, %20 : vector<8x128xf32>
      %22 = math.tanh %21 : vector<8x128xf32>
      %c0_17 = arith.constant 0 : index
      %c0_18 = arith.constant 0 : index
      %23 = vector.load %arg7[%c0_17, %c0_18] : memref<8x128xf32, #tpu.memory_space<vmem>>, vector<8x128xf32>
      tpu.vector_store %arg7[%c0_17, %c0_18], %22 {strides = array<i32>} : memref<8x128xf32, #tpu.memory_space<vmem>>, vector<8x128xf32>,
    } else {
    }
    return
  }
  func.func @transform_0(%arg0: i32, %arg1: i32, %arg2: i32, %arg3: i32) -> (i32, i32, i32) {
    %c0_i32 = arith.constant 0 : i32
    return %arg2, %arg0, %arg3 : i32, i32, i32
  }
  func.func @transform_1(%arg0: i32, %arg1: i32, %arg2: i32, %arg3: i32) -> (i32, i32, i32) {
    %c0_i32 = arith.constant 0 : i32
    return %arg2, %arg3, %arg1 : i32, i32, i32
  }
  func.func @transform_2(%arg0: i32, %arg1: i32, %arg2: i32, %arg3: i32) -> (i32, i32) {
    %c0_i32 = arith.constant 0 : i32
    %c0_i32_0 = arith.constant 0 : i32
    return %c0_i32, %arg1 : i32, i32
  }
  func.func @transform_3(%arg0: i32, %arg1: i32, %arg2: i32, %arg3: i32) -> (i32, i32) {
    %c0_i32 = arith.constant 0 : i32
    return %arg0, %arg1 : i32, i32
  }
}

</mosaic_0001>

<llo_original>
// kernel: _dec_init_pallas.1
$region0: #{_dec_init_pallas.1}
  #allocation0 [shape = 'u32[]', space=smem, size = 0x4, offset = 0x4, fixed_abs, tag = 'smem constant byte address 0x4 - core index']
  #allocation1 [shape = 'u32[144,128]{1,0:T(1,128)}', space=vmem, size = 0x12000, scoped, tag = 'internal scratch']
  #allocation2 [shape = 'f32[8,128]{1,0:T(8,128)}', space=vmem, size = 0x1000, scoped, tag = 'scratch operand']
  %s0 = inlined_call_operand.hbm [shape: f32[2,8,128], index: 0, kind: input, shape index: {}]
  %s1 = inlined_call_operand.hbm [shape: f32[2,128,128], index: 1, kind: input, shape index: {}]
  %s2 = inlined_call_operand.vmem [shape: f32[1,128], index: 2, kind: input, shape index: {}]
  %s3 = inlined_call_operand.hbm [shape: f32[8,128], index: 3, kind: output, shape index: {}]
  %s4 = sld [smem:[#allocation0]]
  $region61: #{_dec_init_pallas.1} parent=0
    _
  %s6 = ssub.s32 1, %s4
  %s7 = scalar_select 0, %s6, %s4
  $region1: #{_dec_init_pallas.1} parent=0
    #allocation3 [shape = 'u8[8192]{0}', space=vmem, size = 0x2000, scoped, tag = 'input window, operand 0']
    #allocation4 [shape = 's32[2]{0}', space=sflag, size = 0x8, scoped, tag = 'scoped memory for _dec_init_pallas.1']
    #allocation5 [shape = 's32[2]{0}', space=sflag, size = 0x8, scoped, tag = 'scoped memory for _dec_init_pallas.1']
    #allocation6 [shape = 'u8[131072]{0}', space=vmem, size = 0x20000, scoped, tag = 'input window, operand 1']
    #allocation7 [shape = 's32[2]{0}', space=sflag, size = 0x8, scoped, tag = 'scoped memory for _dec_init_pallas.1']
    #allocation8 [shape = 'u8[4096]{0}', space=vmem, size = 0x1000, scoped, tag = 'output window, operand 0, single buffered']
    %8 = vsyncpa [#allocation4], 0
    %s9 = scalar_lea.sflag [#allocation4], 1
    %10 = vsyncpa %s9, 0
    %11 = vsyncpa [#allocation7], 0
    %s12 = scalar_lea.sflag [#allocation7], 1
    %13 = vsyncpa %s12, 0
    %14 = vsyncpa [#allocation5], 0
    loop: start=0, step=1, limit=4
    $region2: #{_dec_init_pallas.1} parent=1 // loop_pre_header
      _
    $region3: #{_dec_init_pallas.1} parent=1 // loop_header
      %s16 = sphi 0, %s20
      %p17 = scmp.ge.s32.totalorder %s16, 4
      %s23 = sphi 0, %s49
      %s24 = sphi 0, %s45
      %s25 = sphi 0, %s41
      %s26 = sphi 0, %s37
      %s27 = sphi 0, %s23
      %s28 = sphi 0, %s24
      %s29 = sphi 0, %s25
      %s30 = sphi 0, %s26
      %s31 = sphi 0, %s27
      %s32 = sphi 0, %s28
      %s33 = sphi 0, %s29
      %s34 = sphi 0, %s30
      %s56 = sphi 0, %s58
      %s59 = sphi 0, %s56
      %s60 = sphi 0, %s59
      %s76 = sphi 0, %s60
      %s86 = sphi 0, %s88
      %s89 = sphi 0, %s86
      %s90 = sphi 0, %s89
      %s106 = sphi 0, %s90
      %s112 = sphi 0, %s114
      %s115 = sphi 0, %s112
      %s116 = sphi 0, %s115
      %s132 = sphi 0, %s116
      %s140 = sphi 0, %s142
      %s143 = sphi 0, %s140
      %s144 = sphi 0, %s143
      %s160 = sphi 0, %s144
    $region4: #{_dec_init_pallas.1} parent=1 // loop_header_branch
      %19 = sbr.rel (%p17) target = $region8
    $region5: #{_dec_init_pallas.1} parent=1 // loop_body
      %s21 = ssub.s32 %s16, 1
      %s22 = ssub.s32 %s16, 2
      %s35 = sadd.s32 1, %s26
      %p36 = scmp.ge.s32.totalorder %s35, 1
      %s37 = scalar_select %p36, 0, %s35
      %s38 = sadd.s32 1, %s25
      %s39 = scalar_select %p36, %s38, %s25
      %p40 = scmp.ge.s32.totalorder %s39, 2
      %s41 = scalar_select %p40, 0, %s39
      %s42 = sadd.s32 1, %s24
      %s43 = scalar_select %p40, %s42, %s24
      %p44 = scmp.ge.s32.totalorder %s43, 1
      %s45 = scalar_select %p44, 0, %s43
      %s46 = sadd.s32 1, %s23
      %s47 = scalar_select %p44, %s46, %s23
      %p48 = scmp.ge.s32.totalorder %s47, 1
      %s49 = scalar_select %p48, 0, %s47
      %s50 = ssub.s32 %s25, %s41
      %s51 = ssub.s32 %s23, %s49
      %s52 = sor.u32 %s50, %s51
      %s53 = ssub.s32 %s26, %s37
      %s54 = sor.u32 %s52, %s53
      %p55 = scmp.eq.s32.totalorder %s54, 0
      %s57 = sadd.s32 %s56, 1
      %s58 = scalar_select %p55, %s56, %s57
      %p61 = pneg %p55
      %p62 = scmp.eq.s32.totalorder %s16, 1
      %p63 = por %p61, %p62
      %p64 = scmp.ne.s32.totalorder %s56, %s59
      %p65 = scmp.eq.s32.totalorder %s16, 0
      %p66 = por %p64, %p65
      %p67 = scmp.ne.s32.totalorder %s56, %s59
      %p68 = scmp.eq.s32.totalorder %s21, 1
      %p69 = por %p67, %p68
      %p70 = scmp.ne.s32.totalorder %s59, %s60
      %p71 = scmp.eq.s32.totalorder %s21, 0
      %p72 = por %p70, %p71
      %p73 = scmp.ne.s32.totalorder %s59, %s60
      %p74 = scmp.eq.s32.totalorder %s22, 1
      %p75 = por %p73, %p74
      %p77 = scmp.ne.s32.totalorder %s60, %s76
      %p78 = scmp.eq.s32.totalorder %s22, 0
      %p79 = por %p77, %p78
      %s80 = ssub.s32 %s25, %s41
      %s81 = ssub.s32 %s26, %s37
      %s82 = sor.u32 %s80, %s81
      %s83 = ssub.s32 %s24, %s45
      %s84 = sor.u32 %s82, %s83
      %p85 = scmp.eq.s32.totalorder %s84, 0
      %s87 = sadd.s32 %s86, 1
      %s88 = scalar_select %p85, %s86, %s87
      %p91 = pneg %p85
      %p92 = scmp.eq.s32.totalorder %s16, 1
      %p93 = por %p91, %p92
      %p94 = scmp.ne.s32.totalorder %s86, %s89
      %p95 = scmp.eq.s32.totalorder %s16, 0
      %p96 = por %p94, %p95
      %p97 = scmp.ne.s32.totalorder %s86, %s89
      %p98 = scmp.eq.s32.totalorder %s21, 1
      %p99 = por %p97, %p98
      %p100 = scmp.ne.s32.totalorder %s89, %s90
      %p101 = scmp.eq.s32.totalorder %s21, 0
      %p102 = por %p100, %p101
      %p103 = scmp.ne.s32.totalorder %s89, %s90
      %p104 = scmp.eq.s32.totalorder %s22, 1
      %p105 = por %p103, %p104
      %p107 = scmp.ne.s32.totalorder %s90, %s106
      %p108 = scmp.eq.s32.totalorder %s22, 0
      %p109 = por %p107, %p108
      %s110 = ssub.s32 %s24, %s45
      %p111 = scmp.eq.s32.totalorder %s110, 0
      %s113 = sadd.s32 %s112, 1
      %s114 = scalar_select %p111, %s112, %s113
      %p117 = pneg %p111
      %p118 = scmp.eq.s32.totalorder %s16, 1
      %p119 = por %p117, %p118
      %p120 = scmp.ne.s32.totalorder %s112, %s115
      %p121 = scmp.eq.s32.totalorder %s16, 0
      %p122 = por %p120, %p121
      %p123 = scmp.ne.s32.totalorder %s112, %s115
      %p124 = scmp.eq.s32.totalorder %s21, 1
      %p125 = por %p123, %p124
      %p126 = scmp.ne.s32.totalorder %s115, %s116
      %p127 = scmp.eq.s32.totalorder %s21, 0
      %p128 = por %p126, %p127
      %p129 = scmp.ne.s32.totalorder %s115, %s116
      %p130 = scmp.eq.s32.totalorder %s22, 1
      %p131 = por %p129, %p130
      %p133 = scmp.ne.s32.totalorder %s116, %s132
      %p134 = scmp.eq.s32.totalorder %s22, 0
      %p135 = por %p133, %p134
      %s136 = ssub.s32 %s23, %s49
      %s137 = ssub.s32 %s24, %s45
      %s138 = sor.u32 %s136, %s137
      %p139 = scmp.eq.s32.totalorder %s138, 0
      %s141 = sadd.s32 %s140, 1
      %s142 = scalar_select %p139, %s140, %s141
      %p145 = pneg %p139
      %p146 = scmp.eq.s32.totalorder %s16, 1
      %p147 = por %p145, %p146
      %p148 = scmp.ne.s32.totalorder %s140, %s143
      %p149 = scmp.eq.s32.totalorder %s16, 0
      %p150 = por %p148, %p149
      %p151 = scmp.ne.s32.totalorder %s140, %s143
      %p152 = scmp.eq.s32.totalorder %s21, 1
      %p153 = por %p151, %p152
      %p154 = scmp.ne.s32.totalorder %s143, %s144
      %p155 = scmp.eq.s32.totalorder %s21, 0
      %p156 = por %p154, %p155
      %p157 = scmp.ne.s32.totalorder %s143, %s144
      %p158 = scmp.eq.s32.totalorder %s22, 1
      %p159 = por %p157, %p158
      %p161 = scmp.ne.s32.totalorder %s144, %s160
      %p162 = scmp.eq.s32.totalorder %s22, 0
      %p163 = por %p161, %p162
      %p164 = scmp.le.s32.totalorder 1, %s16
      %p165 = scmp.lt.s32.totalorder %s16, 3
      %p166 = pnand %p164, %p165
      %p167 = pneg %p166
      // Predicated region
      $region9: #{_dec_init_pallas.1} parent=5 // pred_check
        _
      $region10: #{_dec_init_pallas.1} parent=5 // pred_check_branch
        %169 = sbr.rel (%p166) target = $region12
      $region11: #{_dec_init_pallas.1} parent=5 // pred_region
        %s170 = ssub.s32 %s16, 1
        // Predicated region
        $region13: #{_dec_init_pallas.1} parent=11 // pred_check
          %p171 = pneg %p128
        $region14: #{_dec_init_pallas.1} parent=11 // pred_check_branch
          %173 = sbr.rel (%p171) target = $region16
        $region15: #{_dec_init_pallas.1} parent=11 // pred_region
          %p174 = scmp.lt.s32.totalorder %s28, 0
          %s175 = scalar_select %p174, %s28, 0
          %s176 = scalar_lea.vmem %s2, %s175
        $region16: #{_dec_init_pallas.1} parent=11 // pred_fallthru
          _
      $region12: #{_dec_init_pallas.1} parent=5 // pred_fallthru
        _
      %p177 = scmp.lt.s32.totalorder %s16, 2
      // Predicated region
      $region17: #{_dec_init_pallas.1} parent=5 // pred_check
        %p178 = pneg %p177
      $region18: #{_dec_init_pallas.1} parent=5 // pred_check_branch
        %180 = sbr.rel (%p178) target = $region20
      $region19: #{_dec_init_pallas.1} parent=5 // pred_region
        // Predicated region
        $region21: #{_dec_init_pallas.1} parent=19 // pred_check
          %p181 = pneg %p66
        $region22: #{_dec_init_pallas.1} parent=19 // pred_check_branch
          %183 = sbr.rel (%p181) target = $region24
        $region23: #{_dec_init_pallas.1} parent=19 // pred_region
          %s184 = sand.u32 %s56, 1
          %s185 = scalar_lea.sflag [#allocation4], %s184
          %s186 = sand.u32 %s56, 1
          %s187 = smul.addr %s186, 8
          %s188 = scalar_lea.vmem [#allocation3], %s187
          %s190 = ssub.s32 128, 128
          %191 = vsyncadd %s185, %s190
          %s192 = sadd.s32 %s26, %s23
          %s193 = sadd.s32 %s192, %s25
          %s194 = smul.addr %s193, 128
          %s195 = scalar_lea.hbm %s0, %s194
          %s197 = sshll.u32 %s188, 4
          %s198 = int_to_ptr.vmem [resolvable:$true] %s197
          %200 = dma.hbm_to_vmem [thread:$0]  %s195, 128, %s198, %s185
        $region24: #{_dec_init_pallas.1} parent=19 // pred_fallthru
          _
        // Predicated region
        $region25: #{_dec_init_pallas.1} parent=19 // pred_check
          %p201 = pneg %p96
        $region26: #{_dec_init_pallas.1} parent=19 // pred_check_branch
          %203 = sbr.rel (%p201) target = $region28
        $region27: #{_dec_init_pallas.1} parent=19 // pred_region
          %s204 = sand.u32 %s86, 1
          %s205 = scalar_lea.sflag [#allocation7], %s204
          %s206 = sand.u32 %s86, 1
          %s207 = smul.addr %s206, 128
          %s208 = scalar_lea.vmem [#allocation6], %s207
          %s209 = smul.u32 16, %s26
          %s211 = ssub.s32 2048, 2048
          %212 = vsyncadd %s205, %s211
          %s213 = sadd.s32 %s24, %s209
          %s214 = smul.addr %s25, 16
          %s215 = sadd.s32 %s213, %s214
          %s216 = smul.addr %s215, 128
          %s217 = scalar_lea.hbm %s1, %s216
          %s218 = sshll.u32 %s208, 4
          %s219 = int_to_ptr.vmem [resolvable:$true] %s218
          %224 = dma.hbm_to_vmem [thread:$0]  %s217, 2048, %s219, %s205, 128, 128, 8
        $region28: #{_dec_init_pallas.1} parent=19 // pred_fallthru
          _
      $region20: #{_dec_init_pallas.1} parent=5 // pred_fallthru
        _
      %p225 = scmp.le.s32.totalorder 1, %s16
      %p226 = scmp.lt.s32.totalorder %s16, 3
      %p227 = pnand %p225, %p226
      %p228 = pneg %p227
      // Predicated region
      $region29: #{_dec_init_pallas.1} parent=5 // pred_check
        _
      $region30: #{_dec_init_pallas.1} parent=5 // pred_check_branch
        %230 = sbr.rel (%p227) target = $region32
      $region31: #{_dec_init_pallas.1} parent=5 // pred_region
        %s231 = ssub.s32 %s16, 1
        %s232 = sand.u32 %s59, 1
        %s233 = scalar_lea.sflag [#allocation4], %s232
        %s234 = sand.u32 %s59, 1
        %s235 = smul.addr %s234, 8
        %s236 = scalar_lea.vmem [#allocation3], %s235
        // Predicated region
        $region33: #{_dec_init_pallas.1} parent=31 // pred_check
          %p237 = pneg %p72
        $region34: #{_dec_init_pallas.1} parent=31 // pred_check_branch
          %239 = sbr.rel (%p237) target = $region36
        $region35: #{_dec_init_pallas.1} parent=31 // pred_region
          %240 = dma.done %s233, 128
        $region36: #{_dec_init_pallas.1} parent=31 // pred_fallthru
          _
        %s241 = sand.u32 %s89, 1
        %s242 = scalar_lea.sflag [#allocation7], %s241
        %s243 = sand.u32 %s89, 1
        %s244 = smul.addr %s243, 128
        %s245 = scalar_lea.vmem [#allocation6], %s244
        // Predicated region
        $region37: #{_dec_init_pallas.1} parent=31 // pred_check
          %p246 = pneg %p102
        $region38: #{_dec_init_pallas.1} parent=31 // pred_check_branch
          %248 = sbr.rel (%p246) target = $region40
        $region39: #{_dec_init_pallas.1} parent=31 // pred_region
          %249 = dma.done %s242, 2048
        $region40: #{_dec_init_pallas.1} parent=31 // pred_fallthru
          _
        %s250 = sand.u32 %s59, 1
        %s251 = scalar_lea.sflag [#allocation4], %s250
        %s252 = sand.u32 %s59, 1
        %s253 = smul.addr %s252, 8
        %s254 = scalar_lea.vmem [#allocation3], %s253
        %p255 = pneg %p72
        %p256 = pneg %p69
        %s257 = sand.u32 %s89, 1
        %s258 = scalar_lea.sflag [#allocation7], %s257
        %s259 = sand.u32 %s89, 1
        %s260 = smul.addr %s259, 128
        %s261 = scalar_lea.vmem [#allocation6], %s260
        %p262 = pneg %p102
        %p263 = pneg %p99
        %p264 = scmp.lt.s32.totalorder %s28, 0
        %s265 = scalar_select %p264, %s28, 0
        %s266 = scalar_lea.vmem %s2, %s265
        %p267 = pneg %p128
        %p268 = pneg %p125
        %p269 = pneg %p156
        %p270 = pneg %p153
        %s271 = smul.u32 16, %s30
        %p272 = scmp.lt.s32.totalorder %s28, 0
        %s273 = scalar_select %p272, %s28, 0
        %s274 = scalar_lea.vmem %s2, %s273
        %p275 = scmp.eq.s32.totalorder %s29, 0
        %p276 = scmp.eq.s32.totalorder %s30, 0
        %p277 = pnand %p275, %p276
        %p278 = pneg %p277
        // Predicated region
        $region41: #{_dec_init_pallas.1} parent=31 // pred_check
          _
        $region42: #{_dec_init_pallas.1} parent=31 // pred_check_branch
          %280 = sbr.rel (%p277) target = $region44
        $region43: #{_dec_init_pallas.1} parent=31 // pred_region
          %281 = vst [vmem:[#allocation2] sm:$0xff] 0.0
        $region44: #{_dec_init_pallas.1} parent=31 // pred_fallthru
          _
        %v282 = vld [vmem:[#allocation2] sm:$0xff]
        %v283 = vld [vmem:[%s236] sm:$0xff]
        %v284 = vld [vmem:[%s245] sm:$0xff]
        %v285 = vld [vmem:[%s245 + $0x8] sm:$0xff]
        %v286 = vld [vmem:[%s245 + $0x10] sm:$0xff]
        %v287 = vld [vmem:[%s245 + $0x18] sm:$0xff]
        %v288 = vld [vmem:[%s245 + $0x20] sm:$0xff]
        %v289 = vld [vmem:[%s245 + $0x28] sm:$0xff]
        %v290 = vld [vmem:[%s245 + $0x30] sm:$0xff]
        %v291 = vld [vmem:[%s245 + $0x38] sm:$0xff]
        %v292 = vld [vmem:[%s245 + $0x40] sm:$0xff]
        %v293 = vld [vmem:[%s245 + $0x48] sm:$0xff]
        %v294 = vld [vmem:[%s245 + $0x50] sm:$0xff]
        %v295 = vld [vmem:[%s245 + $0x58] sm:$0xff]
        %v296 = vld [vmem:[%s245 + $0x60] sm:$0xff]
        %v297 = vld [vmem:[%s245 + $0x68] sm:$0xff]
        %v298 = vld [vmem:[%s245 + $0x70] sm:$0xff]
        %v299 = vld [vmem:[%s245 + $0x78] sm:$0xff]
        %300 = vmatprep.subr.mxu0 0.0
        %301 = vmatpush1.msra.mxu0 %v284
        %302 = vmatprep.subr.mxu0 0.0
        %303 = vmatpush1.msra.mxu0 %v285
        %304 = vmatprep.subr.mxu0 0.0
        %305 = vmatpush1.msra.mxu0 %v286
        %306 = vmatprep.subr.mxu0 0.0
        %307 = vmatpush1.msra.mxu0 %v287
        %308 = vmatprep.subr.mxu0 0.0
        %309 = vmatpush1.msra.mxu0 %v288
        %310 = vmatprep.subr.mxu0 0.0
        %311 = vmatpush1.msra.mxu0 %v289
        %312 = vmatprep.subr.mxu0 0.0
        %313 = vmatpush1.msra.mxu0 %v290
        %314 = vmatprep.subr.mxu0 0.0
        %315 = vmatpush1.msra.mxu0 %v291
        %316 = vmatprep.subr.mxu0 0.0
        %317 = vmatpush1.msra.mxu0 %v292
        %318 = vmatprep.subr.mxu0 0.0
        %319 = vmatpush1.msra.mxu0 %v293
        %320 = vmatprep.subr.mxu0 0.0
        %321 = vmatpush1.msra.mxu0 %v294
        %322 = vmatprep.subr.mxu0 0.0
        %323 = vmatpush1.msra.mxu0 %v295
        %324 = vmatprep.subr.mxu0 0.0
        %325 = vmatpush1.msra.mxu0 %v296
        %326 = vmatprep.subr.mxu0 0.0
        %327 = vmatpush1.msra.mxu0 %v297
        %328 = vmatprep.subr.mxu0 0.0
        %329 = vmatpush1.msra.mxu0 %v298
        %330 = vmatprep.subr.mxu0 0.0
        %331 = vmatpush1.msra.mxu0 %v299
        %332 = vmatprep.subr.mxu0 0.0
        %333 = vmatpush1.msra.mxu0 0.0
        %334 = vmatprep.subr.mxu0 0.0
        %335 = vmatpush1.msra.mxu0 0.0
        %336 = vmatprep.subr.mxu0 0.0
        %337 = vmatpush1.msra.mxu0 0.0
        %338 = vmatprep.subr.mxu0 0.0
        %339 = vmatpush1.msra.mxu0 0.0
        %340 = vmatprep.subr.mxu0 0.0
        %341 = vmatpush1.msra.mxu0 0.0
        %342 = vmatprep.subr.mxu0 0.0
        %343 = vmatpush1.msra.mxu0 0.0
        %344 = vmatprep.subr.mxu0 0.0
        %345 = vmatpush1.msra.mxu0 0.0
        %346 = vmatprep.subr.mxu0 0.0
        %347 = vmatpush1.msra.mxu0 0.0
        %348 = vmatprep.subr.mxu0 0.0
        %349 = vmatpush1.msra.mxu0 0.0
        %350 = vmatprep.subr.mxu0 0.0
        %351 = vmatpush1.msra.mxu0 0.0
        %352 = vmatprep.subr.mxu0 0.0
        %353 = vmatpush1.msra.mxu0 0.0
        %354 = vmatprep.subr.mxu0 0.0
        %355 = vmatpush1.msra.mxu0 0.0
        %356 = vmatprep.subr.mxu0 0.0
        %357 = vmatpush1.msra.mxu0 0.0
        %358 = vmatprep.subr.mxu0 0.0
        %359 = vmatpush1.msra.mxu0 0.0
        %360 = vmatprep.subr.mxu0 0.0
        %361 = vmatpush1.msra.mxu0 0.0
        %362 = vmatprep.subr.mxu0 0.0
        %363 = vmatpush1.msra.mxu0 0.0
        %364 = vmatprep.mubr.f32.mxu0 0.0
        %365 = vmatmul.mubr.f32.gmra.mrb[0].mxu0 %v283
        %v366 = vpop.f32.mrb[0].mxu0
        %v367 = vadd.f32 0.0, %v366
        %v368 = vpop.f32.mrb[0].mxu0
        %369 = vdwg.mxu0
        %v370 = vadd.f32 %v282, %v367
        %371 = vst [vmem:[#allocation2] sm:$0xff] %v370
        %p372 = scmp.eq.s32.totalorder %s29, 1
        %p373 = pnand %p372, %p276
        %p374 = pneg %p373
        // Predicated region
        $region45: #{_dec_init_pallas.1} parent=31 // pred_check
          _
        $region46: #{_dec_init_pallas.1} parent=31 // pred_check_branch
          %376 = sbr.rel (%p373) target = $region48
        $region47: #{_dec_init_pallas.1} parent=31 // pred_region
          %v377 = vld [vmem:[#allocation2] sm:$0xff]
          %v378 = vld [vmem:[%s274] sm:$0x1]
          %v380 = vlaneseq
          %v381 = vshrl.u32 %v380, 7
          %v382 = vsub.s32 0, %v381
          %v383 = vrot.slane %v378, %v382
          %v385 = vadd.f32 %v377, %v383
          %v386 = vtanh.pop %v385
          %387 = vst [vmem:[#allocation8] sm:$0xff] %v386
        $region48: #{_dec_init_pallas.1} parent=31 // pred_fallthru
          _
        // Predicated region
        $region49: #{_dec_init_pallas.1} parent=31 // pred_check
          %p388 = pneg %p153
        $region50: #{_dec_init_pallas.1} parent=31 // pred_check_branch
          %390 = sbr.rel (%p388) target = $region52
        $region51: #{_dec_init_pallas.1} parent=31 // pred_region
          %s392 = ssub.s32 128, 128
          %393 = vsyncadd [#allocation5], %s392
          %s394 = sadd.s32 %s28, %s27
          %s395 = smul.addr %s394, 128
          %s396 = scalar_lea.hbm %s3, %s395
          %s398 = sshll.u32 [#allocation8], 4
          %s399 = int_to_ptr.vmem [resolvable:$true] %s398
          %401 = dma.vmem_to_hbm [thread:$0]  %s399, 128, %s396, [#allocation5]
        $region52: #{_dec_init_pallas.1} parent=31 // pred_fallthru
          _
        // Predicated region
        $region53: #{_dec_init_pallas.1} parent=31 // pred_check
          %p402 = pneg %p153
        $region54: #{_dec_init_pallas.1} parent=31 // pred_check_branch
          %404 = sbr.rel (%p402) target = $region56
        $region55: #{_dec_init_pallas.1} parent=31 // pred_region
          %405 = dma.done [#allocation5], 128
        $region56: #{_dec_init_pallas.1} parent=31 // pred_fallthru
          _
      $region32: #{_dec_init_pallas.1} parent=5 // pred_fallthru
        _
      %p406 = scmp.le.s32.totalorder 2, %s16
      // Predicated region
      $region57: #{_dec_init_pallas.1} parent=5 // pred_check
        %p407 = pneg %p406
      $region58: #{_dec_init_pallas.1} parent=5 // pred_check_branch
        %409 = sbr.rel (%p407) target = $region60
      $region59: #{_dec_init_pallas.1} parent=5 // pred_region
        %s410 = ssub.s32 %s16, 2
      $region60: #{_dec_init_pallas.1} parent=5 // pred_fallthru
        _
    $region6: #{_dec_init_pallas.1} parent=1 // loop_footer
      %s20 = sadd.s32 1, %s16
    $region7: #{_dec_init_pallas.1} parent=1 // loop_footer_branch
      %15 = sbr.rel target = $region3
    $region8: #{_dec_init_pallas.1} parent=1 // loop_exit
      _
    %411 = vsyncpa [#allocation4], 1
    %s412 = scalar_lea.sflag [#allocation4], 1
    %413 = vsyncpa %s412, 1
    %414 = vsyncpa [#allocation7], 1
    %s415 = scalar_lea.sflag [#allocation7], 1
    %416 = vsyncpa %s415, 1
    %417 = vsyncpa [#allocation5], 1
    %s418 = scalar_lea.sflag [#allocation5], 1
    %419 = vsyncpa %s418, 1

</llo_original>
